<compile_context>
chip_gen: v6e
topology: v6e:2x2x1
jax: 0.10.0
libtpu: 0.0.40
codegen_flags: <defaults>
</compile_context>

<pallas_src>
import functools

import jax
import jax.numpy as jnp
from jax.experimental import pallas as pl
from jax.experimental.pallas import tpu as pltpu

_BN_EPS = 1e-5


def _conv_stats_kernel(x_ref, w_ref, conv_ref, stats_ref, *, K, L_out):
    """Conv1d for one batch row (single collapsed matmul) + per-channel partial BN stats.

    x_ref:     (1, C_in, L)       one batch row, NCL layout (L on lanes)
    w_ref:     (C_out, K*C_in)    weight flattened k-major: w2[o, k*C_in + c] = w[o, c, k]
    conv_ref:  (1, C_out, L_out)  conv output for this row (f32)
    stats_ref: (1, C_out, 2)      per-channel [sum, sum_of_squares] over this row's L_out
    """
    x = x_ref[0]  # (C_in, L)

    # im2col along the (small) contraction axis; rows ordered k-major, c-minor.
    x_col = jnp.concatenate([x[:, k:k + L_out] for k in range(K)], axis=0)  # (K*C_in, L_out)

    # One MXU matmul: (C_out, K*C_in) @ (K*C_in, L_out), f32 accumulate, L_out on lanes.
    acc = jnp.dot(w_ref[...], x_col, preferred_element_type=jnp.float32)    # (C_out, L_out)

    conv_ref[...] = acc[None].astype(conv_ref.dtype)

    # Single-pass per-channel sum / sum-of-squares (reduced over lanes).
    s = jnp.sum(acc, axis=1, keepdims=True)            # (C_out, 1)
    ss = jnp.sum(acc * acc, axis=1, keepdims=True)     # (C_out, 1)
    stats_ref[...] = jnp.concatenate([s, ss], axis=1)[None]  # (1, C_out, 2)


def _norm_relu_kernel(conv_ref, a_ref, b_ref, o_ref):
    """Fused BatchNorm affine (precomputed per-channel a, b) + ReLU.

    conv_ref: (1, C_out, L_out)  f32 conv output for this batch row
    a_ref:    (C_out, 1)         gamma * rsqrt(var + eps)
    b_ref:    (C_out, 1)         beta - mean * a
    o_ref:    (1, C_out, L_out)
    """
    y = conv_ref[...] * a_ref[...] + b_ref[...]
    o_ref[...] = jnp.maximum(y, 0.0).astype(o_ref.dtype)


def lazy_conv_block(x_ncl, weight_oik, gamma, beta):
    """x_ncl: (N, C_in, L) PyTorch layout.  Returns (N, C_out, L_out), L_out = L - K + 1."""
    N, C_in, L = x_ncl.shape
    C_out, C_in_w, K = weight_oik.shape
    assert C_in == C_in_w, "input channels must match the conv weight"
    assert L >= K, "Conv1d with no padding requires L >= kernel_size"
    L_out = L - K + 1

    # Tiny glue: flatten weight to (C_out, K*C_in), columns k-major to match the kernel im2col.
    w2 = jnp.transpose(weight_oik, (0, 2, 1)).reshape(C_out, K * C_in)

    parallel = pltpu.CompilerParams(dimension_semantics=("parallel",))

    # ---- Pass 1: conv + per-row partial BatchNorm statistics (grid over N, megacore-parallel).
    conv_out, stats = pl.pallas_call(
        functools.partial(_conv_stats_kernel, K=K, L_out=L_out),
        out_shape=(
            jax.ShapeDtypeStruct((N, C_out, L_out), jnp.float32),
            jax.ShapeDtypeStruct((N, C_out, 2), jnp.float32),
        ),
        grid_spec=pltpu.PrefetchScalarGridSpec(
            num_scalar_prefetch=0,
            grid=(N,),
            in_specs=[
                pl.BlockSpec((1, C_in, L), lambda n: (n, 0, 0)),
                pl.BlockSpec((C_out, K * C_in), lambda n: (0, 0)),  # weight stays resident
            ],
            out_specs=[
                pl.BlockSpec((1, C_out, L_out), lambda n: (n, 0, 0)),
                pl.BlockSpec((1, C_out, 2), lambda n: (n, 0, 0)),
            ],
        ),
        compiler_params=parallel,
    )(x_ncl, w2)

    # ---- Tiny per-channel fold (O(C_out) scalars): BatchNorm(train) -> y = a*x + b.
    # Note: running_mean/running_var buffer updates (stateful training side-effect) are not
    # produced here; only the forward output is computed.
    count = jnp.float32(N * L_out)
    totals = jnp.sum(stats, axis=0)                                  # (C_out, 2)
    mean = totals[:, 0] / count
    var = jnp.maximum(totals[:, 1] / count - mean * mean, 0.0)       # biased variance
    a = gamma.astype(jnp.float32) * jax.lax.rsqrt(var + _BN_EPS)
    b = beta.astype(jnp.float32) - mean * a
    a2 = a.reshape(C_out, 1)
    b2 = b.reshape(C_out, 1)

    # ---- Pass 2: normalize + ReLU (elementwise, lane-dense, megacore-parallel).
    out = pl.pallas_call(
        _norm_relu_kernel,
        out_shape=jax.ShapeDtypeStruct((N, C_out, L_out), x_ncl.dtype),
        grid_spec=pltpu.PrefetchScalarGridSpec(
            num_scalar_prefetch=0,
            grid=(N,),
            in_specs=[
                pl.BlockSpec((1, C_out, L_out), lambda n: (n, 0, 0)),
                pl.BlockSpec((C_out, 1), lambda n: (0, 0)),
                pl.BlockSpec((C_out, 1), lambda n: (0, 0)),
            ],
            out_specs=pl.BlockSpec((1, C_out, L_out), lambda n: (n, 0, 0)),
        ),
        compiler_params=parallel,
    )(conv_out, a2, b2)

    return out


def _reference(x, w, gamma, beta):
    """Pure-JAX reference matching Conv1d(bias=False) + BatchNorm1d(train) + ReLU."""
    N, C_in, L = x.shape
    C_out, _, K = w.shape
    L_out = L - K + 1
    conv = jnp.zeros((N, C_out, L_out), jnp.float32)
    for k in range(K):
        conv = conv + jnp.einsum("oc,ncl->nol", w[:, :, k], x[:, :, k:k + L_out])
    mean = conv.mean(axis=(0, 2), keepdims=True)
    var = ((conv - mean) ** 2).mean(axis=(0, 2), keepdims=True)
    y = (conv - mean) * jax.lax.rsqrt(var + _BN_EPS) * gamma[None, :, None] + beta[None, :, None]
    return jnp.maximum(y, 0.0)


if __name__ == "__main__":
    # Small shapes consistent with the module: Conv1d over (N, C_in, L).
    N, C_in, L = 2, 4, 16
    C_out, K = 8, 3

    key = jax.random.PRNGKey(0)
    kx, kw = jax.random.split(key)

    x = jax.random.normal(kx, (N, C_in, L), dtype=jnp.float32)
    # Conv weight in PyTorch shape (C_out, C_in, K); bias=False because norm=True.
    weight = jax.random.normal(kw, (C_out, C_in, K), dtype=jnp.float32) * 0.1
    # Freshly-initialized BatchNorm1d parameters.
    gamma = jnp.ones((C_out,), jnp.float32)
    beta = jnp.zeros((C_out,), jnp.float32)

    out = lazy_conv_block(x, weight, gamma, beta)
    out = jax.block_until_ready(out)
    assert out.shape == (N, C_out, L - K + 1)

    ref = _reference(x, weight, gamma, beta)
    assert jnp.allclose(out, ref, atol=1e-3, rtol=1e-3), float(jnp.max(jnp.abs(out - ref)))

    print("KERNEL_OK")
</pallas_src>

<mosaic_0001>
module attributes {stable_mosaic.version = 11 : i64} {
  func.func @_conv_stats_kernel(%arg0: i32, %arg1: memref<1x4x16xf32, #tpu.memory_space<vmem>>, %arg2: memref<8x12xf32, #tpu.memory_space<vmem>>, %arg3: memref<1x8x14xf32, #tpu.memory_space<vmem>>, %arg4: memref<1x8x2xf32, #tpu.memory_space<vmem>>) attributes {dimension_semantics = [#tpu.dimension_semantics<parallel>], iteration_bounds = array<i64: 2>, scalar_prefetch = 0 : i64, scratch_operands = 0 : i64, tpu.core_type = #tpu.core_type<tc>, window_params = [{transform_indices = @transform_0, window_bounds = array<i64: 1, 4, 16>}, {pipeline_mode = #tpu.pipeline_mode<synchronous>, transform_indices = @transform_1, window_bounds = array<i64: 8, 12>}, {transform_indices = @transform_2, window_bounds = array<i64: 1, 8, 14>}, {transform_indices = @transform_3, window_bounds = array<i64: 1, 8, 2>}]} {
    %c0 = arith.constant 0 : index
    %c0_0 = arith.constant 0 : index
    %c0_1 = arith.constant 0 : index
    %0 = vector.load %arg1[%c0, %c0_0, %c0_1] : memref<1x4x16xf32, #tpu.memory_space<vmem>>, vector<1x4x16xf32>
    %1 = vector.shape_cast %0 : vector<1x4x16xf32> to vector<4x16xf32>
    %2 = vector.extract_strided_slice %1 {offsets = [0, 0], sizes = [4, 14], strides = [1, 1]} : vector<4x16xf32> to vector<4x14xf32>
    %3 = vector.extract_strided_slice %1 {offsets = [0, 1], sizes = [4, 14], strides = [1, 1]} : vector<4x16xf32> to vector<4x14xf32>
    %4 = vector.extract_strided_slice %1 {offsets = [0, 2], sizes = [4, 14], strides = [1, 1]} : vector<4x16xf32> to vector<4x14xf32>
    %5 = tpu.concatenate %2, %3, %4 in 0 : vector<4x14xf32>, vector<4x14xf32>, vector<4x14xf32> -> vector<12x14xf32>
    %c0_2 = arith.constant 0 : index
    %c0_3 = arith.constant 0 : index
    %6 = vector.load %arg2[%c0_2, %c0_3] : memref<8x12xf32, #tpu.memory_space<vmem>>, vector<8x12xf32>
    %cst = arith.constant dense<0.000000e+00> : vector<8x14xf32>
    %7 = tpu.matmul %6, %5, %cst {dimension_numbers = #tpu.dot_dimension_numbers<[1], [0], [0], [1], [0, 0, 1, 1], [], []>} : vector<8x12xf32>, vector<12x14xf32>, vector<8x14xf32> -> vector<8x14xf32>
    %8 = vector.shape_cast %7 : vector<8x14xf32> to vector<1x8x14xf32>
    %c0_4 = arith.constant 0 : index
    %c0_5 = arith.constant 0 : index
    %c0_6 = arith.constant 0 : index
    %9 = vector.load %arg3[%c0_4, %c0_5, %c0_6] : memref<1x8x14xf32, #tpu.memory_space<vmem>>, vector<1x8x14xf32>
    tpu.vector_store %arg3[%c0_4, %c0_5, %c0_6], %8 {strides = array<i32>} : memref<1x8x14xf32, #tpu.memory_space<vmem>>, vector<1x8x14xf32>,
    %cst_7 = arith.constant dense<0.000000e+00> : vector<8xf32>
    %10 = vector.multi_reduction <add>, %7, %cst_7 [1] : vector<8x14xf32> to vector<8xf32>
    %11 = vector.shape_cast %10 : vector<8xf32> to vector<8x1xf32>
    %12 = arith.mulf %7, %7 : vector<8x14xf32>
    %cst_8 = arith.constant dense<0.000000e+00> : vector<8xf32>
    %13 = vector.multi_reduction <add>, %12, %cst_8 [1] : vector<8x14xf32> to vector<8xf32>
    %14 = vector.shape_cast %13 : vector<8xf32> to vector<8x1xf32>
    %15 = tpu.concatenate %11, %14 in 1 : vector<8x1xf32>, vector<8x1xf32> -> vector<8x2xf32>
    %16 = vector.shape_cast %15 : vector<8x2xf32> to vector<1x8x2xf32>
    %c0_9 = arith.constant 0 : index
    %c0_10 = arith.constant 0 : index
    %c0_11 = arith.constant 0 : index
    %17 = vector.load %arg4[%c0_9, %c0_10, %c0_11] : memref<1x8x2xf32, #tpu.memory_space<vmem>>, vector<1x8x2xf32>
    tpu.vector_store %arg4[%c0_9, %c0_10, %c0_11], %16 {strides = array<i32>} : memref<1x8x2xf32, #tpu.memory_space<vmem>>, vector<1x8x2xf32>,
    return
  }
  func.func @transform_0(%arg0: i32) -> (i32, i32, i32) {
    %c0_i32 = arith.constant 0 : i32
    %c0_i32_0 = arith.constant 0 : i32
    %c0_i32_1 = arith.constant 0 : i32
    return %arg0, %c0_i32, %c0_i32_0 : i32, i32, i32
  }
  func.func @transform_1(%arg0: i32) -> (i32, i32) {
    %c0_i32 = arith.constant 0 : i32
    %c0_i32_0 = arith.constant 0 : i32
    %c0_i32_1 = arith.constant 0 : i32
    return %c0_i32, %c0_i32_0 : i32, i32
  }
  func.func @transform_2(%arg0: i32) -> (i32, i32, i32) {
    %c0_i32 = arith.constant 0 : i32
    %c0_i32_0 = arith.constant 0 : i32
    %c0_i32_1 = arith.constant 0 : i32
    return %arg0, %c0_i32, %c0_i32_0 : i32, i32, i32
  }
  func.func @transform_3(%arg0: i32) -> (i32, i32, i32) {
    %c0_i32 = arith.constant 0 : i32
    %c0_i32_0 = arith.constant 0 : i32
    %c0_i32_1 = arith.constant 0 : i32
    return %arg0, %c0_i32, %c0_i32_0 : i32, i32, i32
  }
}

</mosaic_0001>

<llo_original>
// kernel: tpu_custom_call.1
$region0: #{tpu_custom_call.1}
  #allocation0 [shape = 'u32[]', space=smem, size = 0x4, offset = 0x4, fixed_abs, tag = 'smem constant byte address 0x4 - core index']
  #allocation1 [shape = 'u32[144,128]{1,0:T(1,128)}', space=vmem, size = 0x12000, scoped, tag = 'internal scratch']
  %s0 = inlined_call_operand.hbm [shape: f32[2,4,16], index: 0, kind: input, shape index: {}]
  %s1 = inlined_call_operand.hbm [shape: f32[8,12], index: 1, kind: input, shape index: {}]
  %s2 = inlined_call_operand.hbm [shape: f32[2,8,14], index: 2, kind: output, shape index: {0}]
  %s3 = inlined_call_operand.vmem [shape: f32[2,8,2], index: 3, kind: output, shape index: {1}]
  %4 = xla_tuple %s2, %s3
  %s5 = sld [smem:[#allocation0]]
  $region57: #{tpu_custom_call.1} parent=0
    _
  %s7 = ssub.s32 1, %s5
  %s8 = scalar_select 0, %s7, %s5
  $region1: #{tpu_custom_call.1} parent=0
    #allocation2 [shape = 'u8[4096]{0}', space=vmem, size = 0x1000, scoped, tag = 'input window, operand 0']
    #allocation3 [shape = 's32[2]{0}', space=sflag, size = 0x8, scoped, tag = 'scoped memory for tpu_custom_call.1']
    #allocation4 [shape = 's32[2]{0}', space=sflag, size = 0x8, scoped, tag = 'scoped memory for tpu_custom_call.1']
    #allocation5 [shape = 'u8[4096]{0}', space=vmem, size = 0x1000, scoped, tag = 'input window, operand 1, single buffered']
    #allocation6 [shape = 's32[1]{0}', space=sflag, size = 0x4, scoped, tag = 'scoped memory for tpu_custom_call.1']
    #allocation7 [shape = 'u8[8192]{0}', space=vmem, size = 0x2000, scoped, tag = 'output window, operand 0']
    %9 = vsyncpa [#allocation3], 0
    %s10 = scalar_lea.sflag [#allocation3], 1
    %11 = vsyncpa %s10, 0
    %12 = vsyncpa [#allocation6], 0
    %13 = vsyncpa [#allocation4], 0
    %s14 = scalar_lea.sflag [#allocation4], 1
    %15 = vsyncpa %s14, 0
    loop: start=0, step=1, limit=4
    $region2: #{tpu_custom_call.1} parent=1 // loop_pre_header
      _
    $region3: #{tpu_custom_call.1} parent=1 // loop_header
      %s17 = sphi 0, %s21
      %p18 = scmp.ge.s32.totalorder %s17, 4
      %s27 = sphi 0, %s29
      %s30 = sphi 0, %s27
      %s31 = sphi 0, %s30
      %s47 = sphi 0, %s31
      %s51 = sphi 0, %s51
      %s53 = sphi 0, %s51
      %s54 = sphi 0, %s53
      %s68 = sphi 0, %s54
      %s74 = sphi 0, %s76
      %s77 = sphi 0, %s74
      %s78 = sphi 0, %s77
      %s94 = sphi 0, %s78
      %s100 = sphi 0, %s102
      %s103 = sphi 0, %s100
      %s104 = sphi 0, %s103
      %s120 = sphi 0, %s104
    $region4: #{tpu_custom_call.1} parent=1 // loop_header_branch
      %20 = sbr.rel (%p18) target = $region8
    $region5: #{tpu_custom_call.1} parent=1 // loop_body
      %s22 = ssub.s32 %s17, 1
      %s23 = ssub.s32 %s17, 2
      %s24 = sadd.s32 %s17, 1
      %s25 = ssub.s32 %s17, %s24
      %p26 = scmp.eq.s32.totalorder %s25, 0
      %s28 = sadd.s32 %s27, 1
      %s29 = scalar_select %p26, %s27, %s28
      %p32 = pneg %p26
      %p33 = scmp.eq.s32.totalorder %s17, 1
      %p34 = por %p32, %p33
      %p35 = scmp.ne.s32.totalorder %s27, %s30
      %p36 = scmp.eq.s32.totalorder %s17, 0
      %p37 = por %p35, %p36
      %p38 = scmp.ne.s32.totalorder %s27, %s30
      %p39 = scmp.eq.s32.totalorder %s22, 1
      %p40 = por %p38, %p39
      %p41 = scmp.ne.s32.totalorder %s30, %s31
      %p42 = scmp.eq.s32.totalorder %s22, 0
      %p43 = por %p41, %p42
      %p44 = scmp.ne.s32.totalorder %s30, %s31
      %p45 = scmp.eq.s32.totalorder %s23, 1
      %p46 = por %p44, %p45
      %p48 = scmp.ne.s32.totalorder %s31, %s47
      %p49 = scmp.eq.s32.totalorder %s23, 0
      %p50 = por %p48, %p49
      %s52 = sadd.s32 %s51, 1
      %p55 = scmp.eq.s32.totalorder %s17, 1
      %p56 = scmp.ne.s32.totalorder %s51, %s53
      %p57 = scmp.eq.s32.totalorder %s17, 0
      %p58 = por %p56, %p57
      %p59 = scmp.ne.s32.totalorder %s51, %s53
      %p60 = scmp.eq.s32.totalorder %s22, 1
      %p61 = por %p59, %p60
      %p62 = scmp.ne.s32.totalorder %s53, %s54
      %p63 = scmp.eq.s32.totalorder %s22, 0
      %p64 = por %p62, %p63
      %p65 = scmp.ne.s32.totalorder %s53, %s54
      %p66 = scmp.eq.s32.totalorder %s23, 1
      %p67 = por %p65, %p66
      %p69 = scmp.ne.s32.totalorder %s54, %s68
      %p70 = scmp.eq.s32.totalorder %s23, 0
      %p71 = por %p69, %p70
      %s72 = ssub.s32 %s17, %s24
      %p73 = scmp.eq.s32.totalorder %s72, 0
      %s75 = sadd.s32 %s74, 1
      %s76 = scalar_select %p73, %s74, %s75
      %p79 = pneg %p73
      %p80 = scmp.eq.s32.totalorder %s17, 1
      %p81 = por %p79, %p80
      %p82 = scmp.ne.s32.totalorder %s74, %s77
      %p83 = scmp.eq.s32.totalorder %s17, 0
      %p84 = por %p82, %p83
      %p85 = scmp.ne.s32.totalorder %s74, %s77
      %p86 = scmp.eq.s32.totalorder %s22, 1
      %p87 = por %p85, %p86
      %p88 = scmp.ne.s32.totalorder %s77, %s78
      %p89 = scmp.eq.s32.totalorder %s22, 0
      %p90 = por %p88, %p89
      %p91 = scmp.ne.s32.totalorder %s77, %s78
      %p92 = scmp.eq.s32.totalorder %s23, 1
      %p93 = por %p91, %p92
      %p95 = scmp.ne.s32.totalorder %s78, %s94
      %p96 = scmp.eq.s32.totalorder %s23, 0
      %p97 = por %p95, %p96
      %s98 = ssub.s32 %s17, %s24
      %p99 = scmp.eq.s32.totalorder %s98, 0
      %s101 = sadd.s32 %s100, 1
      %s102 = scalar_select %p99, %s100, %s101
      %p105 = pneg %p99
      %p106 = scmp.eq.s32.totalorder %s17, 1
      %p107 = por %p105, %p106
      %p108 = scmp.ne.s32.totalorder %s100, %s103
      %p109 = scmp.eq.s32.totalorder %s17, 0
      %p110 = por %p108, %p109
      %p111 = scmp.ne.s32.totalorder %s100, %s103
      %p112 = scmp.eq.s32.totalorder %s22, 1
      %p113 = por %p111, %p112
      %p114 = scmp.ne.s32.totalorder %s103, %s104
      %p115 = scmp.eq.s32.totalorder %s22, 0
      %p116 = por %p114, %p115
      %p117 = scmp.ne.s32.totalorder %s103, %s104
      %p118 = scmp.eq.s32.totalorder %s23, 1
      %p119 = por %p117, %p118
      %p121 = scmp.ne.s32.totalorder %s104, %s120
      %p122 = scmp.eq.s32.totalorder %s23, 0
      %p123 = por %p121, %p122
      %p124 = scmp.le.s32.totalorder 1, %s17
      %p125 = scmp.lt.s32.totalorder %s17, 3
      %p126 = pnand %p124, %p125
      %p127 = pneg %p126
      // Predicated region
      $region9: #{tpu_custom_call.1} parent=5 // pred_check
        _
      $region10: #{tpu_custom_call.1} parent=5 // pred_check_branch
        %129 = sbr.rel (%p126) target = $region12
      $region11: #{tpu_custom_call.1} parent=5 // pred_region
        %s130 = ssub.s32 %s17, 1
        // Predicated region
        $region13: #{tpu_custom_call.1} parent=11 // pred_check
          %p131 = pneg %p64
        $region14: #{tpu_custom_call.1} parent=11 // pred_check_branch
          %133 = sbr.rel (%p131) target = $region16
        $region15: #{tpu_custom_call.1} parent=11 // pred_region
          %s135 = ssub.s32 128, 128
          %136 = vsyncadd [#allocation6], %s135
          %s138 = sshll.u32 [#allocation5], 4
          %s139 = int_to_ptr.vmem [resolvable:$true] %s138
          %141 = dma.hbm_to_vmem [thread:$0]  %s1, 128, %s139, [#allocation6]
        $region16: #{tpu_custom_call.1} parent=11 // pred_fallthru
          _
      $region12: #{tpu_custom_call.1} parent=5 // pred_fallthru
        _
      %p142 = scmp.lt.s32.totalorder %s17, 2
      // Predicated region
      $region17: #{tpu_custom_call.1} parent=5 // pred_check
        %p143 = pneg %p142
      $region18: #{tpu_custom_call.1} parent=5 // pred_check_branch
        %145 = sbr.rel (%p143) target = $region20
      $region19: #{tpu_custom_call.1} parent=5 // pred_region
        // Predicated region
        $region21: #{tpu_custom_call.1} parent=19 // pred_check
          %p146 = pneg %p37
        $region22: #{tpu_custom_call.1} parent=19 // pred_check_branch
          %148 = sbr.rel (%p146) target = $region24
        $region23: #{tpu_custom_call.1} parent=19 // pred_region
          %s149 = sand.u32 %s27, 1
          %s150 = scalar_lea.sflag [#allocation3], %s149
          %s151 = sand.u32 %s27, 1
          %s152 = smul.addr %s151, 4
          %s153 = scalar_lea.vmem [#allocation2], %s152
          %s155 = ssub.s32 64, 64
          %156 = vsyncadd %s150, %s155
          %s157 = smul.addr %s17, 64
          %s158 = scalar_lea.hbm %s0, %s157
          %s160 = sshll.u32 %s153, 4
          %s161 = int_to_ptr.vmem [resolvable:$true] %s160
          %163 = dma.hbm_to_vmem [thread:$0]  %s158, 64, %s161, %s150
        $region24: #{tpu_custom_call.1} parent=19 // pred_fallthru
          _
      $region20: #{tpu_custom_call.1} parent=5 // pred_fallthru
        _
      %p164 = scmp.le.s32.totalorder 1, %s17
      %p165 = scmp.lt.s32.totalorder %s17, 3
      %p166 = pnand %p164, %p165
      %p167 = pneg %p166
      // Predicated region
      $region25: #{tpu_custom_call.1} parent=5 // pred_check
        _
      $region26: #{tpu_custom_call.1} parent=5 // pred_check_branch
        %169 = sbr.rel (%p166) target = $region28
      $region27: #{tpu_custom_call.1} parent=5 // pred_region
        %s170 = ssub.s32 %s17, 1
        %s171 = sand.u32 %s30, 1
        %s172 = scalar_lea.sflag [#allocation3], %s171
        %s173 = sand.u32 %s30, 1
        %s174 = smul.addr %s173, 4
        %s175 = scalar_lea.vmem [#allocation2], %s174
        // Predicated region
        $region29: #{tpu_custom_call.1} parent=27 // pred_check
          %p176 = pneg %p43
        $region30: #{tpu_custom_call.1} parent=27 // pred_check_branch
          %178 = sbr.rel (%p176) target = $region32
        $region31: #{tpu_custom_call.1} parent=27 // pred_region
          %179 = dma.done %s172, 64
        $region32: #{tpu_custom_call.1} parent=27 // pred_fallthru
          _
        // Predicated region
        $region33: #{tpu_custom_call.1} parent=27 // pred_check
          %p180 = pneg %p64
        $region34: #{tpu_custom_call.1} parent=27 // pred_check_branch
          %182 = sbr.rel (%p180) target = $region36
        $region35: #{tpu_custom_call.1} parent=27 // pred_region
          %183 = dma.done [#allocation6], 128
        $region36: #{tpu_custom_call.1} parent=27 // pred_fallthru
          _
        %s184 = sand.u32 %s30, 1
        %s185 = scalar_lea.sflag [#allocation3], %s184
        %s186 = sand.u32 %s30, 1
        %s187 = smul.addr %s186, 4
        %s188 = scalar_lea.vmem [#allocation2], %s187
        %p189 = pneg %p43
        %p190 = pneg %p40
        %p191 = pneg %p64
        %p192 = pneg %p61
        %p193 = pneg %p90
        %p194 = pneg %p87
        %s195 = sand.u32 %s77, 1
        %s196 = scalar_lea.sflag [#allocation4], %s195
        %s197 = sand.u32 %s77, 1
        %s198 = smul.addr %s197, 8
        %s199 = scalar_lea.vmem [#allocation7], %s198
        %p200 = pneg %p116
        %p201 = pneg %p113
        %p202 = scmp.lt.s32.totalorder %s22, 1
        %s203 = scalar_select %p202, %s22, 1
        %s204 = smul.addr %s203, 8
        %s205 = scalar_lea.vmem %s3, %s204
        %p206 = scmp.lt.s32.totalorder %s22, 1
        %s207 = scalar_select %p206, %s22, 1
        %s208 = smul.addr %s207, 8
        %s209 = scalar_lea.vmem %s3, %s208
        %v210 = vld [vmem:[%s175] sm:$0xf]
        %v212 = vrot.slane %v210, 4
        %213 = vrot.lane.b32.xlu0 %v212, 127
        %v214 = vpop.permute.xlu0 %213
        %216 = vrot.lane.b32.xlu0 %v210, 126
        %v217 = vpop.permute.xlu0 %216
        %vm218 = vcmask 1043456
        %v219 = vsel %vm218, %v210, %v214
        %v220 = vld [vmem:[#allocation5] sm:$0xff]
        %vm221 = vcmask 97280
        %v223 = vsel %vm221, %v220, 0
        %v225 = vsel %vm218, %v217, 0
        %227 = vmatprep.subr.mxu0 0.0
        %228 = vmatpush1.msra.mxu0 0.0
        %229 = vmatprep.subr.mxu0 0.0
        %230 = vmatpush1.msra.mxu0 0.0
        %231 = vmatprep.subr.mxu0 0.0
        %232 = vmatpush1.msra.mxu0 0.0
        %233 = vmatprep.subr.mxu0 0.0
        %234 = vmatpush1.msra.mxu0 0.0
        %235 = vmatprep.subr.mxu0 0.0
        %236 = vmatpush1.msra.mxu0 0.0
        %237 = vmatprep.subr.mxu0 0.0
        %238 = vmatpush1.msra.mxu0 0.0
        %239 = vmatprep.subr.mxu0 0.0
        %240 = vmatpush1.msra.mxu0 0.0
        %241 = vmatprep.subr.mxu0 0.0
        %242 = vmatpush1.msra.mxu0 0.0
        %243 = vmatprep.subr.mxu0 0.0
        %244 = vmatpush1.msra.mxu0 0.0
        %245 = vmatprep.subr.mxu0 0.0
        %246 = vmatpush1.msra.mxu0 0.0
        %247 = vmatprep.subr.mxu0 0.0
        %248 = vmatpush1.msra.mxu0 0.0
        %249 = vmatprep.subr.mxu0 0.0
        %250 = vmatpush1.msra.mxu0 0.0
        %251 = vmatprep.subr.mxu0 0.0
        %252 = vmatpush1.msra.mxu0 0.0
        %253 = vmatprep.subr.mxu0 0.0
        %254 = vmatpush1.msra.mxu0 0.0
        %255 = vmatprep.subr.mxu0 0.0
        %256 = vmatpush1.msra.mxu0 %v225
        %257 = vmatprep.subr.mxu0 0.0
        %258 = vmatpush1.msra.mxu0 %v219
        %259 = vmatprep.subr.mxu0 0.0
        %260 = vmatpush2.msra.mxu0 0.0
        %261 = vmatprep.subr.mxu0 0.0
        %262 = vmatpush2.msra.mxu0 0.0
        %263 = vmatprep.subr.mxu0 0.0
        %264 = vmatpush2.msra.mxu0 0.0
        %265 = vmatprep.subr.mxu0 0.0
        %266 = vmatpush2.msra.mxu0 0.0
        %267 = vmatprep.subr.mxu0 0.0
        %268 = vmatpush2.msra.mxu0 0.0
        %269 = vmatprep.subr.mxu0 0.0
        %270 = vmatpush2.msra.mxu0 0.0
        %271 = vmatprep.subr.mxu0 0.0
        %272 = vmatpush2.msra.mxu0 0.0
        %273 = vmatprep.subr.mxu0 0.0
        %274 = vmatpush2.msra.mxu0 0.0
        %275 = vmatprep.subr.mxu0 0.0
        %276 = vmatpush2.msra.mxu0 0.0
        %277 = vmatprep.subr.mxu0 0.0
        %278 = vmatpush2.msra.mxu0 0.0
        %279 = vmatprep.subr.mxu0 0.0
        %280 = vmatpush2.msra.mxu0 0.0
        %281 = vmatprep.subr.mxu0 0.0
        %282 = vmatpush2.msra.mxu0 0.0
        %283 = vmatprep.subr.mxu0 0.0
        %284 = vmatpush2.msra.mxu0 0.0
        %285 = vmatprep.subr.mxu0 0.0
        %286 = vmatpush2.msra.mxu0 0.0
        %287 = vmatprep.subr.mxu0 0.0
        %288 = vmatpush2.msra.mxu0 0.0
        %289 = vmatprep.subr.mxu0 0.0
        %290 = vmatpush2.msra.mxu0 0.0
        %291 = vmatprep.mubr.f32.mxu0 0.0
        %292 = vmatmul.mubr.f32.gmra.mxu0 %v223
        %v293 = vpop.f32.mrf.mxu0
        %v294 = vadd.f32 0.0, %v293
        %v295 = vpop.f32.mrf.mxu0
        %296 = vdwg.mxu0
        %vm297 = vcmask 113664
        %298 = vst.msk [vmem:[%s199] sm:$0xff] %vm297, %v294
        %v299 = vsel %vm297, %v294, 0.0
        %300 = vadd.xlane.f32.xlu0 %v299
        %v301 = vpop.xlane.xlu0 %300
        %v302 = vmul.f32 %v294, %v294
        %v303 = vsel %vm297, %v302, 0.0
        %304 = vadd.xlane.f32.xlu0 %v303
        %v305 = vpop.xlane.xlu0 %304
        %vm306 = vcmask 7168
        %v307 = vsel %vm306, %v301, %v305
        %vm308 = vcmask 15360
        %309 = vst.msk [vmem:[%s209] sm:$0xff] %vm308, %v307
        %s310 = sand.u32 %s77, 1
        %s311 = scalar_lea.sflag [#allocation4], %s310
        %s312 = sand.u32 %s77, 1
        %s313 = smul.addr %s312, 8
        %s314 = scalar_lea.vmem [#allocation7], %s313
        %p315 = scmp.lt.s32.totalorder %s22, 1
        %s316 = scalar_select %p315, %s22, 1
        %s317 = smul.addr %s316, 8
        %s318 = scalar_lea.vmem %s3, %s317
        // Predicated region
        $region37: #{tpu_custom_call.1} parent=27 // pred_check
          %p319 = pneg %p87
        $region38: #{tpu_custom_call.1} parent=27 // pred_check_branch
          %321 = sbr.rel (%p319) target = $region40
        $region39: #{tpu_custom_call.1} parent=27 // pred_region
          %s323 = ssub.s32 128, 128
          %324 = vsyncadd %s311, %s323
          %s325 = smul.addr %s22, 128
          %s326 = scalar_lea.hbm %s2, %s325
          %s328 = sshll.u32 %s314, 4
          %s329 = int_to_ptr.vmem [resolvable:$true] %s328
          %331 = dma.vmem_to_hbm [thread:$0]  %s329, 128, %s326, %s311
        $region40: #{tpu_custom_call.1} parent=27 // pred_fallthru
          _
        // Predicated region
        $region41: #{tpu_custom_call.1} parent=27 // pred_check
          %p332 = pneg %p113
        $region42: #{tpu_custom_call.1} parent=27 // pred_check_branch
          %334 = sbr.rel (%p332) target = $region44
        $region43: #{tpu_custom_call.1} parent=27 // pred_region
          _
        $region44: #{tpu_custom_call.1} parent=27 // pred_fallthru
          _
      $region28: #{tpu_custom_call.1} parent=5 // pred_fallthru
        _
      %p335 = scmp.le.s32.totalorder 2, %s17
      // Predicated region
      $region45: #{tpu_custom_call.1} parent=5 // pred_check
        %p336 = pneg %p335
      $region46: #{tpu_custom_call.1} parent=5 // pred_check_branch
        %338 = sbr.rel (%p336) target = $region48
      $region47: #{tpu_custom_call.1} parent=5 // pred_region
        %s339 = ssub.s32 %s17, 2
        // Predicated region
        $region49: #{tpu_custom_call.1} parent=47 // pred_check
          %p340 = pneg %p93
        $region50: #{tpu_custom_call.1} parent=47 // pred_check_branch
          %342 = sbr.rel (%p340) target = $region52
        $region51: #{tpu_custom_call.1} parent=47 // pred_region
          %s343 = sand.u32 %s78, 1
          %s344 = scalar_lea.sflag [#allocation4], %s343
          %s345 = sand.u32 %s78, 1
          %s346 = smul.addr %s345, 8
          %s347 = scalar_lea.vmem [#allocation7], %s346
          %348 = dma.done %s344, 128
        $region52: #{tpu_custom_call.1} parent=47 // pred_fallthru
          _
        // Predicated region
        $region53: #{tpu_custom_call.1} parent=47 // pred_check
          %p349 = pneg %p119
        $region54: #{tpu_custom_call.1} parent=47 // pred_check_branch
          %351 = sbr.rel (%p349) target = $region56
        $region55: #{tpu_custom_call.1} parent=47 // pred_region
          %p352 = scmp.lt.s32.totalorder %s23, 1
          %s353 = scalar_select %p352, %s23, 1
          %s354 = smul.addr %s353, 8
          %s355 = scalar_lea.vmem %s3, %s354
        $region56: #{tpu_custom_call.1} parent=47 // pred_fallthru
          _
      $region48: #{tpu_custom_call.1} parent=5 // pred_fallthru
        _
    $region6: #{tpu_custom_call.1} parent=1 // loop_footer
      %s21 = sadd.s32 1, %s17
    $region7: #{tpu_custom_call.1} parent=1 // loop_footer_branch
      %16 = sbr.rel target = $region3
    $region8: #{tpu_custom_call.1} parent=1 // loop_exit
      _
    %356 = vsyncpa [#allocation3], 1
    %s357 = scalar_lea.sflag [#allocation3], 1
    %358 = vsyncpa %s357, 1
    %359 = vsyncpa [#allocation6], 1
    %360 = vsyncpa [#allocation4], 1
    %s361 = scalar_lea.sflag [#allocation4], 1
    %362 = vsyncpa %s361, 1

</llo_original>
